<compile_context>
chip_gen: v7x
topology: tpu7x:2x2x1
jax: 0.10.0
libtpu: 0.0.40
codegen_flags: <defaults>
</compile_context>

<pallas_src>
import math
from functools import partial

import jax
import jax.numpy as jnp
from jax.experimental import pallas as pl
from jax.experimental.pallas import tpu as pltpu


def _transition_kernel(x_ref, scale_ref, shift_ref, w_ref, o_ref):
    # x_ref:     (tb, 2, Wh, 2C)  axis 1 = top/bottom row of each 2x2 window,
    #                             lane axis folds (column parity, channel).
    # scale_ref: (1, 2C)          folded BN scale, channel pattern tiled x2.
    # shift_ref: (1, 2C)          folded BN shift, channel pattern tiled x2.
    # w_ref:     (2C, Coutp)      1x1 conv weight stacked twice along the
    #                             contraction dim (horizontal pool happens
    #                             inside the matmul); 0.25 pre-folded.
    # o_ref:     (tb*Wh, Coutp)   lane-dense output tile.
    scale = scale_ref[...]                        # elementwise compute dtype
    shift = shift_ref[...]
    cdt = scale.dtype

    xa = x_ref[:, 0, :, :].astype(cdt)            # (tb, Wh, 2C) top rows
    xb = x_ref[:, 1, :, :].astype(cdt)            # (tb, Wh, 2C) bottom rows

    zero = jnp.zeros((), cdt)
    # BN + ReLU per original pixel (VPU), then the vertical half of the pool.
    h = (jnp.maximum(xa * scale + shift, zero)
         + jnp.maximum(xb * scale + shift, zero))

    tb, wh, c2 = h.shape
    # Free view when Wh % 8 == 0 (sublane aligned); otherwise Mosaic emits a
    # per-tile repack (still correct, just slower).
    # TODO(synk): restructure the block for Wh % 8 != 0 stages so this
    # collapse stays relayout-free.
    h2d = h.reshape(tb * wh, c2).astype(w_ref.dtype)

    # Single MXU matmul: contraction over (column parity, channel) performs
    # the horizontal pool sum and the 1x1 conv at once; f32 accumulation.
    o_ref[...] = jnp.dot(h2d, w_ref[...],
                         preferred_element_type=jnp.float32).astype(o_ref.dtype)


def _round_up(v, m):
    return ((v + m - 1) // m) * m


def _round_down_to(v, m):
    return (v // m) * m


def _vmem_capacity_bytes():
    try:
        cap = getattr(pltpu.get_tpu_info(), "vmem_capacity_bytes", None)
        if cap:
            return int(cap)
    except Exception:
        pass
    return 64 * 1024 * 1024            # conservative default (v7x-sized VMEM)


def _const_block_spec(shape, index_map, single_buffer):
    """BlockSpec for an input whose block never changes across the grid."""
    if single_buffer and hasattr(pl, "Buffered"):
        try:
            return pl.BlockSpec(shape, index_map, pipeline_mode=pl.Buffered(1))
        except TypeError:              # older BlockSpec without pipeline_mode
            pass
    return pl.BlockSpec(shape, index_map)


def _choose_tb(M2, Wh, tb_max, prefer_even_grid):
    """Row-group tile size: (tb*Wh) % 8 == 0, fits VMEM, sensible grid."""
    step = 8 // math.gcd(Wh, 8)        # alignment so (tb*Wh) % 8 == 0
    if M2 <= step:
        return M2                      # full-extent block is always legal
    tb_cap = max(step, _round_down_to(min(tb_max, M2), step))
    tb = max(step, _round_down_to(max(1, 512 // Wh), step))   # ~512 rows/tile
    tb = min(tb, tb_cap)
    # Prefer >= 8 grid steps while each tile keeps >= 128 output rows.
    while pl.cdiv(M2, tb) < 8 and tb >= 2 * step and (tb // 2) * Wh >= 128:
        tb = max(step, _round_down_to(tb // 2, step))
    # Never a single-step grid if the problem can be split (DMA/compute overlap).
    if pl.cdiv(M2, tb) < 2:
        tb = max(step, _round_down_to(pl.cdiv(M2, 2), step))
    # v7x megacore: keep the step count even so both TensorCores stay balanced.
    if prefer_even_grid:
        g = pl.cdiv(M2, tb)
        if g > 1 and g % 2 == 1:
            cand = max(step, _round_down_to(pl.cdiv(M2, g + 1), step))
            if pl.cdiv(M2, cand) % 2 == 0:
                tb = cand
    return tb


def transition_forward(x_nchw, gamma, beta, conv_w, eps=1e-5,
                       matmul_dtype=jnp.bfloat16, out_dtype=jnp.float32,
                       single_buffer_consts=True):
    """Pallas implementation of Transition.forward.  x_nchw: (N, Cin, H, W)."""
    x_nchw = x_nchw.astype(jnp.float32)
    N, C, H, W = x_nchw.shape
    Cout = conv_w.shape[0]
    assert H % 2 == 0 and W % 2 == 0

    vmem_cap = _vmem_capacity_bytes()
    small_vmem = vmem_cap <= 64 * 1024 * 1024       # v7x-class TensorCore
    # Elementwise (BN+ReLU+row-add) dtype: bf16 on v7x-class, f32 elsewhere.
    ew_dtype = matmul_dtype if small_vmem else jnp.float32
    store_dtype = jnp.bfloat16                      # halves kernel store traffic

    # ---- layout: one NCHW->NHWC transpose (+ cast), then FREE reshapes only --
    x_nhwc = jnp.transpose(x_nchw, (0, 2, 3, 1)).astype(matmul_dtype)  # (N,H,W,C)
    Wh = W // 2
    M2 = N * (H // 2)                               # number of 2-row groups
    xr = x_nhwc.reshape(M2, 2, Wh, 2 * C)           # contiguous -> no copy

    # ---- BatchNorm2d (training-mode) stats from the already-cast NHWC array --
    # (the f32 NCHW input is read from HBM only once; f32 accumulation here)
    xs = x_nhwc.astype(jnp.float32)
    m1 = jnp.mean(xs, axis=(0, 1, 2))
    m2 = jnp.mean(xs * xs, axis=(0, 1, 2))
    var = jnp.maximum(m2 - m1 * m1, 0.0)            # biased variance (PyTorch)
    scale = gamma.astype(jnp.float32) * jax.lax.rsqrt(var + eps)
    shift = beta.astype(jnp.float32) - m1 * scale
    scale2 = jnp.concatenate([scale, scale]).reshape(1, 2 * C).astype(ew_dtype)
    shift2 = jnp.concatenate([shift, shift]).reshape(1, 2 * C).astype(ew_dtype)

    # ---- conv weight: (Cout,C,1,1) -> (2C, Coutp); pool factor folded --------
    wmat = conv_w.reshape(Cout, C).astype(jnp.float32).T            # (C, Cout)
    w2 = jnp.concatenate([wmat, wmat], axis=0) * 0.25               # (2C, Cout)
    Coutp = _round_up(Cout, 128)                                    # lane-dense
    w2 = jnp.pad(w2, ((0, 0), (0, Coutp - Cout))).astype(matmul_dtype)

    # ---- VMEM accounting: tiles + resident constants + kernel temporaries ----
    mm_item = jnp.dtype(matmul_dtype).itemsize
    ew_item = jnp.dtype(ew_dtype).itemsize
    st_item = jnp.dtype(store_dtype).itemsize
    c2 = 2 * C
    c2_pad = _round_up(c2, 128)
    wh_pad = _round_up(Wh, 8)
    n_const_buf = 1 if (single_buffer_consts and hasattr(pl, "Buffered")) else 2
    const_bytes = n_const_buf * (_round_up(c2, 8) * Coutp * mm_item      # weight
                                 + 2 * 8 * c2_pad * ew_item)             # scale+shift
    per_tb = (2 * (2 * wh_pad * c2_pad * mm_item)       # x tile, double-buffered
              + 2 * (Wh * Coutp * st_item)              # out tile, double-buffered
              + wh_pad * c2_pad * ew_item               # h (BN+ReLU+add) temp
              + Wh * c2_pad * mm_item)                  # h2d cast temp
    tile_budget = int(0.375 * vmem_cap)                 # ~24 MiB v7x / 48 MiB v5e-v6e
    tb_max = max(1, (tile_budget - const_bytes) // per_tb)
    tb = _choose_tb(M2, Wh, tb_max, prefer_even_grid=small_vmem)
    grid = (pl.cdiv(M2, tb),)

    M = M2 * Wh
    cost = pl.CostEstimate(
        flops=2 * M * c2 * Coutp,
        transcendentals=0,
        bytes_accessed=(xr.size * xr.dtype.itemsize
                        + w2.size * w2.dtype.itemsize
                        + 2 * c2 * ew_item
                        + M * Coutp * st_item),
    )

    const_spec = partial(_const_block_spec, single_buffer=single_buffer_consts)
    out_flat = pl.pallas_call(
        _transition_kernel,
        out_shape=jax.ShapeDtypeStruct((M, Coutp), store_dtype),
        grid_spec=pltpu.PrefetchScalarGridSpec(
            num_scalar_prefetch=0,
            grid=grid,
            in_specs=[
                pl.BlockSpec((tb, 2, Wh, c2), lambda m: (m, 0, 0, 0)),
                const_spec((1, c2), lambda m: (0, 0)),
                const_spec((1, c2), lambda m: (0, 0)),
                const_spec((c2, Coutp), lambda m: (0, 0)),
            ],
            out_specs=pl.BlockSpec((tb * Wh, Coutp), lambda m: (m, 0)),
        ),
        compiler_params=pltpu.CompilerParams(
            dimension_semantics=("parallel",),
            vmem_limit_bytes=int(0.75 * vmem_cap),
        ),
        cost_estimate=cost,
    )(xr, scale2, shift2, w2)

    # Epilogue: drop lane padding, back to NCHW, requested dtype.
    # TODO(synk): if the consumer accepts NHWC (and padded Cout), this slice +
    # transpose pass disappears; when Cout is already a multiple of 128 the
    # slice is a no-op.
    out = out_flat[:, :Cout].astype(out_dtype).reshape(N, H // 2, Wh, Cout)
    return jnp.transpose(out, (0, 3, 1, 2))


def transition_reference(x, gamma, beta, conv_w, eps=1e-5):
    """Pure-JAX f32 reference mirroring the PyTorch module."""
    x = x.astype(jnp.float32)
    mean = jnp.mean(x, axis=(0, 2, 3), keepdims=True)
    var = jnp.var(x, axis=(0, 2, 3), keepdims=True)
    xn = (x - mean) * jax.lax.rsqrt(var + eps)
    xn = xn * gamma.reshape(1, -1, 1, 1) + beta.reshape(1, -1, 1, 1)
    h = jnp.maximum(xn, 0.0)
    wmat = conv_w.reshape(conv_w.shape[0], -1)                      # (Cout, Cin)
    y = jnp.einsum("nchw,oc->nohw", h, wmat)
    Nn, O, Hh, Ww = y.shape
    y = y.reshape(Nn, O, Hh // 2, 2, Ww // 2, 2).mean(axis=(3, 5))
    return y


if __name__ == "__main__":
    in_planes, out_planes = 4, 8
    N, H, W = 2, 16, 16

    key = jax.random.PRNGKey(0)
    kx, kw = jax.random.split(key)
    x = jax.random.normal(kx, (N, in_planes, H, W), dtype=jnp.float32)

    # Deterministic parameters (synthetic init; BN affine + 1x1 conv weight).
    gamma = jnp.linspace(0.5, 1.5, in_planes, dtype=jnp.float32)
    beta = jnp.linspace(-0.1, 0.1, in_planes, dtype=jnp.float32)
    conv_w = 0.1 * jax.random.normal(
        kw, (out_planes, in_planes, 1, 1), dtype=jnp.float32)

    try:
        fwd = jax.jit(transition_forward)
        out = jax.block_until_ready(fwd(x, gamma, beta, conv_w))
    except Exception:
        # Fallback: double-buffered constant inputs (for Pallas versions where
        # per-BlockSpec pipeline_mode=pl.Buffered(1) is not supported).
        fwd = jax.jit(partial(transition_forward, single_buffer_consts=False))
        out = jax.block_until_ready(fwd(x, gamma, beta, conv_w))

    ref = transition_reference(x, gamma, beta, conv_w)

    assert out.shape == (N, out_planes, H // 2, W // 2), out.shape
    max_err = float(jnp.max(jnp.abs(out - ref)))
    # bf16 MXU inputs + bf16 stores (f32 accumulation) -> bf16-level tolerance.
    assert jnp.allclose(out, ref, rtol=2e-2, atol=2e-2), max_err
    print("KERNEL_OK")
</pallas_src>

<mosaic_0001>
module attributes {stable_mosaic.version = 11 : i64} {
  func.func @_transition_kernel(%arg0: i32, %arg1: memref<8x2x8x8xbf16, #tpu.memory_space<vmem>>, %arg2: memref<1x8xbf16, #tpu.memory_space<vmem>>, %arg3: memref<1x8xbf16, #tpu.memory_space<vmem>>, %arg4: memref<8x128xbf16, #tpu.memory_space<vmem>>, %arg5: memref<64x128xbf16, #tpu.memory_space<vmem>>) attributes {dimension_semantics = [#tpu.dimension_semantics<parallel>], iteration_bounds = array<i64: 2>, scalar_prefetch = 0 : i64, scratch_operands = 0 : i64, tpu.core_type = #tpu.core_type<tc>, window_params = [{transform_indices = @transform_0, window_bounds = array<i64: 8, 2, 8, 8>}, {pipeline_mode = #tpu.pipeline_mode<synchronous>, transform_indices = @transform_1, window_bounds = array<i64: 1, 8>}, {pipeline_mode = #tpu.pipeline_mode<synchronous>, transform_indices = @transform_2, window_bounds = array<i64: 1, 8>}, {pipeline_mode = #tpu.pipeline_mode<synchronous>, transform_indices = @transform_3, window_bounds = array<i64: 8, 128>}, {transform_indices = @transform_4, window_bounds = array<i64: 64, 128>}]} {
    %c0 = arith.constant 0 : index
    %c0_0 = arith.constant 0 : index
    %0 = vector.load %arg2[%c0, %c0_0] : memref<1x8xbf16, #tpu.memory_space<vmem>>, vector<1x8xbf16>
    %c0_1 = arith.constant 0 : index
    %c0_2 = arith.constant 0 : index
    %1 = vector.load %arg3[%c0_1, %c0_2] : memref<1x8xbf16, #tpu.memory_space<vmem>>, vector<1x8xbf16>
    %c0_3 = arith.constant 0 : index
    %c0_4 = arith.constant 0 : index
    %c0_5 = arith.constant 0 : index
    %c0_6 = arith.constant 0 : index
    %2 = vector.load %arg1[%c0_3, %c0_4, %c0_5, %c0_6] : memref<8x2x8x8xbf16, #tpu.memory_space<vmem>>, vector<8x1x8x8xbf16>
    %3 = vector.shape_cast %2 : vector<8x1x8x8xbf16> to vector<8x8x8xbf16>
    %c0_7 = arith.constant 0 : index
    %c1 = arith.constant 1 : index
    %c0_8 = arith.constant 0 : index
    %c0_9 = arith.constant 0 : index
    %4 = vector.load %arg1[%c0_7, %c1, %c0_8, %c0_9] : memref<8x2x8x8xbf16, #tpu.memory_space<vmem>>, vector<8x1x8x8xbf16>
    %5 = vector.shape_cast %4 : vector<8x1x8x8xbf16> to vector<8x8x8xbf16>
    %6 = vector.shape_cast %0 : vector<1x8xbf16> to vector<1x1x8xbf16>
    %7 = vector.broadcast %6 : vector<1x1x8xbf16> to vector<8x8x8xbf16>
    %8 = arith.mulf %3, %7 : vector<8x8x8xbf16>
    %9 = vector.shape_cast %1 : vector<1x8xbf16> to vector<1x1x8xbf16>
    %10 = vector.broadcast %9 : vector<1x1x8xbf16> to vector<8x8x8xbf16>
    %11 = arith.addf %8, %10 : vector<8x8x8xbf16>
    %cst = arith.constant 0.000000e+00 : bf16
    %12 = vector.broadcast %cst : bf16 to vector<8x8x8xbf16>
    %13 = arith.maximumf %11, %12 : vector<8x8x8xbf16>
    %14 = vector.shape_cast %0 : vector<1x8xbf16> to vector<1x1x8xbf16>
    %15 = vector.broadcast %14 : vector<1x1x8xbf16> to vector<8x8x8xbf16>
    %16 = arith.mulf %5, %15 : vector<8x8x8xbf16>
    %17 = vector.shape_cast %1 : vector<1x8xbf16> to vector<1x1x8xbf16>
    %18 = vector.broadcast %17 : vector<1x1x8xbf16> to vector<8x8x8xbf16>
    %19 = arith.addf %16, %18 : vector<8x8x8xbf16>
    %cst_10 = arith.constant 0.000000e+00 : bf16
    %20 = vector.broadcast %cst_10 : bf16 to vector<8x8x8xbf16>
    %21 = arith.maximumf %19, %20 : vector<8x8x8xbf16>
    %22 = arith.addf %13, %21 : vector<8x8x8xbf16>
    %23 = vector.shape_cast %22 : vector<8x8x8xbf16> to vector<64x8xbf16>
    %c0_11 = arith.constant 0 : index
    %c0_12 = arith.constant 0 : index
    %24 = vector.load %arg4[%c0_11, %c0_12] : memref<8x128xbf16, #tpu.memory_space<vmem>>, vector<8x128xbf16>
    %cst_13 = arith.constant dense<0.000000e+00> : vector<64x128xf32>
    %25 = tpu.matmul %23, %24, %cst_13 {dimension_numbers = #tpu.dot_dimension_numbers<[1], [0], [0], [1], [0, 0, 1, 1], [], []>} : vector<64x8xbf16>, vector<8x128xbf16>, vector<64x128xf32> -> vector<64x128xf32>
    %26 = arith.truncf %25 : vector<64x128xf32> to vector<64x128xbf16>
    %c0_14 = arith.constant 0 : index
    %c0_15 = arith.constant 0 : index
    %27 = vector.load %arg5[%c0_14, %c0_15] : memref<64x128xbf16, #tpu.memory_space<vmem>>, vector<64x128xbf16>
    tpu.vector_store %arg5[%c0_14, %c0_15], %26 {strides = array<i32>} : memref<64x128xbf16, #tpu.memory_space<vmem>>, vector<64x128xbf16>,
    return
  }
  func.func @transform_0(%arg0: i32) -> (i32, i32, i32, i32) {
    %c0_i32 = arith.constant 0 : i32
    %c0_i32_0 = arith.constant 0 : i32
    %c0_i32_1 = arith.constant 0 : i32
    %c0_i32_2 = arith.constant 0 : i32
    return %arg0, %c0_i32, %c0_i32_0, %c0_i32_1 : i32, i32, i32, i32
  }
  func.func @transform_1(%arg0: i32) -> (i32, i32) {
    %c0_i32 = arith.constant 0 : i32
    %c0_i32_0 = arith.constant 0 : i32
    %c0_i32_1 = arith.constant 0 : i32
    return %c0_i32, %c0_i32_0 : i32, i32
  }
  func.func @transform_2(%arg0: i32) -> (i32, i32) {
    %c0_i32 = arith.constant 0 : i32
    %c0_i32_0 = arith.constant 0 : i32
    %c0_i32_1 = arith.constant 0 : i32
    return %c0_i32, %c0_i32_0 : i32, i32
  }
  func.func @transform_3(%arg0: i32) -> (i32, i32) {
    %c0_i32 = arith.constant 0 : i32
    %c0_i32_0 = arith.constant 0 : i32
    %c0_i32_1 = arith.constant 0 : i32
    return %c0_i32, %c0_i32_0 : i32, i32
  }
  func.func @transform_4(%arg0: i32) -> (i32, i32) {
    %c0_i32 = arith.constant 0 : i32
    %c0_i32_0 = arith.constant 0 : i32
    return %arg0, %c0_i32 : i32, i32
  }
}

module attributes {stable_mosaic.version = 11 : i64} {
  func.func @_transition_kernel(%arg0: i32, %arg1: memref<8x2x8x8xbf16, #tpu.memory_space<vmem>>, %arg2: memref<1x8xbf16, #tpu.memory_space<vmem>>, %arg3: memref<1x8xbf16, #tpu.memory_space<vmem>>, %arg4: memref<8x128xbf16, #tpu.memory_space<vmem>>, %arg5: memref<64x128xbf16, #tpu.memory_space<vmem>>) attributes {dimension_semantics = [#tpu.dimension_semantics<parallel>], iteration_bounds = array<i64: 2>, scalar_prefetch = 0 : i64, scratch_operands = 0 : i64, tpu.core_type = #tpu.core_type<tc>, window_params = [{transform_indices = @transform_0, window_bounds = array<i64: 8, 2, 8, 8>}, {pipeline_mode = #tpu.pipeline_mode<synchronous>, transform_indices = @transform_1, window_bounds = array<i64: 1, 8>}, {pipeline_mode = #tpu.pipeline_mode<synchronous>, transform_indices = @transform_2, window_bounds = array<i64: 1, 8>}, {pipeline_mode = #tpu.pipeline_mode<synchronous>, transform_indices = @transform_3, window_bounds = array<i64: 8, 128>}, {transform_indices = @transform_4, window_bounds = array<i64: 64, 128>}]} {
    %c0 = arith.constant 0 : index
    %c0_0 = arith.constant 0 : index
    %0 = vector.load %arg2[%c0, %c0_0] : memref<1x8xbf16, #tpu.memory_space<vmem>>, vector<1x8xbf16>
    %c0_1 = arith.constant 0 : index
    %c0_2 = arith.constant 0 : index
    %1 = vector.load %arg3[%c0_1, %c0_2] : memref<1x8xbf16, #tpu.memory_space<vmem>>, vector<1x8xbf16>
    %c0_3 = arith.constant 0 : index
    %c0_4 = arith.constant 0 : index
    %c0_5 = arith.constant 0 : index
    %c0_6 = arith.constant 0 : index
    %2 = vector.load %arg1[%c0_3, %c0_4, %c0_5, %c0_6] : memref<8x2x8x8xbf16, #tpu.memory_space<vmem>>, vector<8x1x8x8xbf16>
    %3 = vector.shape_cast %2 : vector<8x1x8x8xbf16> to vector<8x8x8xbf16>
    %c0_7 = arith.constant 0 : index
    %c1 = arith.constant 1 : index
    %c0_8 = arith.constant 0 : index
    %c0_9 = arith.constant 0 : index
    %4 = vector.load %arg1[%c0_7, %c1, %c0_8, %c0_9] : memref<8x2x8x8xbf16, #tpu.memory_space<vmem>>, vector<8x1x8x8xbf16>
    %5 = vector.shape_cast %4 : vector<8x1x8x8xbf16> to vector<8x8x8xbf16>
    %6 = vector.shape_cast %0 : vector<1x8xbf16> to vector<1x1x8xbf16>
    %7 = vector.broadcast %6 : vector<1x1x8xbf16> to vector<8x8x8xbf16>
    %8 = arith.mulf %3, %7 : vector<8x8x8xbf16>
    %9 = vector.shape_cast %1 : vector<1x8xbf16> to vector<1x1x8xbf16>
    %10 = vector.broadcast %9 : vector<1x1x8xbf16> to vector<8x8x8xbf16>
    %11 = arith.addf %8, %10 : vector<8x8x8xbf16>
    %cst = arith.constant 0.000000e+00 : bf16
    %12 = vector.broadcast %cst : bf16 to vector<8x8x8xbf16>
    %13 = arith.maximumf %11, %12 : vector<8x8x8xbf16>
    %14 = vector.shape_cast %0 : vector<1x8xbf16> to vector<1x1x8xbf16>
    %15 = vector.broadcast %14 : vector<1x1x8xbf16> to vector<8x8x8xbf16>
    %16 = arith.mulf %5, %15 : vector<8x8x8xbf16>
    %17 = vector.shape_cast %1 : vector<1x8xbf16> to vector<1x1x8xbf16>
    %18 = vector.broadcast %17 : vector<1x1x8xbf16> to vector<8x8x8xbf16>
    %19 = arith.addf %16, %18 : vector<8x8x8xbf16>
    %cst_10 = arith.constant 0.000000e+00 : bf16
    %20 = vector.broadcast %cst_10 : bf16 to vector<8x8x8xbf16>
    %21 = arith.maximumf %19, %20 : vector<8x8x8xbf16>
    %22 = arith.addf %13, %21 : vector<8x8x8xbf16>
    %23 = vector.shape_cast %22 : vector<8x8x8xbf16> to vector<64x8xbf16>
    %c0_11 = arith.constant 0 : index
    %c0_12 = arith.constant 0 : index
    %24 = vector.load %arg4[%c0_11, %c0_12] : memref<8x128xbf16, #tpu.memory_space<vmem>>, vector<8x128xbf16>
    %cst_13 = arith.constant dense<0.000000e+00> : vector<64x128xf32>
    %25 = tpu.matmul %23, %24, %cst_13 {dimension_numbers = #tpu.dot_dimension_numbers<[1], [0], [0], [1], [0, 0, 1, 1], [], []>} : vector<64x8xbf16>, vector<8x128xbf16>, vector<64x128xf32> -> vector<64x128xf32>
    %26 = arith.truncf %25 : vector<64x128xf32> to vector<64x128xbf16>
    %c0_14 = arith.constant 0 : index
    %c0_15 = arith.constant 0 : index
    %27 = vector.load %arg5[%c0_14, %c0_15] : memref<64x128xbf16, #tpu.memory_space<vmem>>, vector<64x128xbf16>
    tpu.vector_store %arg5[%c0_14, %c0_15], %26 {strides = array<i32>} : memref<64x128xbf16, #tpu.memory_space<vmem>>, vector<64x128xbf16>,
    return
  }
  func.func @transform_0(%arg0: i32) -> (i32, i32, i32, i32) {
    %c0_i32 = arith.constant 0 : i32
    %c0_i32_0 = arith.constant 0 : i32
    %c0_i32_1 = arith.constant 0 : i32
    %c0_i32_2 = arith.constant 0 : i32
    return %arg0, %c0_i32, %c0_i32_0, %c0_i32_1 : i32, i32, i32, i32
  }
  func.func @transform_1(%arg0: i32) -> (i32, i32) {
    %c0_i32 = arith.constant 0 : i32
    %c0_i32_0 = arith.constant 0 : i32
    %c0_i32_1 = arith.constant 0 : i32
    return %c0_i32, %c0_i32_0 : i32, i32
  }
  func.func @transform_2(%arg0: i32) -> (i32, i32) {
    %c0_i32 = arith.constant 0 : i32
    %c0_i32_0 = arith.constant 0 : i32
    %c0_i32_1 = arith.constant 0 : i32
    return %c0_i32, %c0_i32_0 : i32, i32
  }
  func.func @transform_3(%arg0: i32) -> (i32, i32) {
    %c0_i32 = arith.constant 0 : i32
    %c0_i32_0 = arith.constant 0 : i32
    %c0_i32_1 = arith.constant 0 : i32
    return %c0_i32, %c0_i32_0 : i32, i32
  }
  func.func @transform_4(%arg0: i32) -> (i32, i32) {
    %c0_i32 = arith.constant 0 : i32
    %c0_i32_0 = arith.constant 0 : i32
    return %arg0, %c0_i32 : i32, i32
  }
}

</mosaic_0001>

<llo_original>
// kernel: transition_forward.1
$region0: #{transition_forward.1}
  #allocation0 [shape = 'u32[]', space=smem, size = 0x4, offset = 0x4, fixed_abs, tag = 'smem constant byte address 0x4 - core index']
  #allocation1 [shape = 'u32[144,128]{1,0:T(1,128)}', space=vmem, size = 0x12000, scoped, tag = 'internal scratch']
  %s0 = inlined_call_operand.vmem [shape: bf16[16,2,8,8], index: 0, kind: input, shape index: {}]
  %s1 = inlined_call_operand.vmem [shape: bf16[1,8], index: 1, kind: input, shape index: {}]
  %s2 = inlined_call_operand.vmem [shape: bf16[1,8], index: 2, kind: input, shape index: {}]
  %s3 = inlined_call_operand.vmem [shape: bf16[8,128], index: 3, kind: input, shape index: {}]
  %s4 = inlined_call_operand.vmem [shape: bf16[128,128], index: 4, kind: output, shape index: {}]
  %s5 = sld [smem:[#allocation0]]
  $region49: #{transition_forward.1} parent=0
    _
  %s7 = ssub.s32 1, %s5
  %s8 = scalar_select 0, %s7, %s5
  loop: start=0, step=1, limit=4
  $region2: #{transition_forward.1} parent=0 // loop_pre_header
    _
  $region3: #{transition_forward.1} parent=0 // loop_header
    %s10 = sphi 0, %s14
    %p11 = scmp.ge.s32.totalorder %s10, 4
    %s20 = sphi 0, %s22
    %s23 = sphi 0, %s20
    %s24 = sphi 0, %s23
    %s40 = sphi 0, %s24
    %s44 = sphi 0, %s44
    %s46 = sphi 0, %s44
    %s47 = sphi 0, %s46
    %s61 = sphi 0, %s47
    %s65 = sphi 0, %s65
    %s67 = sphi 0, %s65
    %s68 = sphi 0, %s67
    %s82 = sphi 0, %s68
    %s86 = sphi 0, %s86
    %s88 = sphi 0, %s86
    %s89 = sphi 0, %s88
    %s103 = sphi 0, %s89
    %s109 = sphi 0, %s111
    %s112 = sphi 0, %s109
    %s113 = sphi 0, %s112
    %s129 = sphi 0, %s113
  $region4: #{transition_forward.1} parent=0 // loop_header_branch
    %13 = sbr.rel (%p11) target = $region8
  $region5: #{transition_forward.1} parent=0 // loop_body
    %s15 = ssub.s32 %s10, 1
    %s16 = ssub.s32 %s10, 2
    %s17 = sadd.s32 %s10, 1
    %s18 = ssub.s32 %s10, %s17
    %p19 = scmp.eq.s32.totalorder %s18, 0
    %s21 = sadd.s32 %s20, 1
    %s22 = scalar_select %p19, %s20, %s21
    %p25 = pneg %p19
    %p26 = scmp.eq.s32.totalorder %s10, 1
    %p27 = por %p25, %p26
    %p28 = scmp.ne.s32.totalorder %s20, %s23
    %p29 = scmp.eq.s32.totalorder %s10, 0
    %p30 = por %p28, %p29
    %p31 = scmp.ne.s32.totalorder %s20, %s23
    %p32 = scmp.eq.s32.totalorder %s15, 1
    %p33 = por %p31, %p32
    %p34 = scmp.ne.s32.totalorder %s23, %s24
    %p35 = scmp.eq.s32.totalorder %s15, 0
    %p36 = por %p34, %p35
    %p37 = scmp.ne.s32.totalorder %s23, %s24
    %p38 = scmp.eq.s32.totalorder %s16, 1
    %p39 = por %p37, %p38
    %p41 = scmp.ne.s32.totalorder %s24, %s40
    %p42 = scmp.eq.s32.totalorder %s16, 0
    %p43 = por %p41, %p42
    %s45 = sadd.s32 %s44, 1
    %p48 = scmp.eq.s32.totalorder %s10, 1
    %p49 = scmp.ne.s32.totalorder %s44, %s46
    %p50 = scmp.eq.s32.totalorder %s10, 0
    %p51 = por %p49, %p50
    %p52 = scmp.ne.s32.totalorder %s44, %s46
    %p53 = scmp.eq.s32.totalorder %s15, 1
    %p54 = por %p52, %p53
    %p55 = scmp.ne.s32.totalorder %s46, %s47
    %p56 = scmp.eq.s32.totalorder %s15, 0
    %p57 = por %p55, %p56
    %p58 = scmp.ne.s32.totalorder %s46, %s47
    %p59 = scmp.eq.s32.totalorder %s16, 1
    %p60 = por %p58, %p59
    %p62 = scmp.ne.s32.totalorder %s47, %s61
    %p63 = scmp.eq.s32.totalorder %s16, 0
    %p64 = por %p62, %p63
    %s66 = sadd.s32 %s65, 1
    %p69 = scmp.eq.s32.totalorder %s10, 1
    %p70 = scmp.ne.s32.totalorder %s65, %s67
    %p71 = scmp.eq.s32.totalorder %s10, 0
    %p72 = por %p70, %p71
    %p73 = scmp.ne.s32.totalorder %s65, %s67
    %p74 = scmp.eq.s32.totalorder %s15, 1
    %p75 = por %p73, %p74
    %p76 = scmp.ne.s32.totalorder %s67, %s68
    %p77 = scmp.eq.s32.totalorder %s15, 0
    %p78 = por %p76, %p77
    %p79 = scmp.ne.s32.totalorder %s67, %s68
    %p80 = scmp.eq.s32.totalorder %s16, 1
    %p81 = por %p79, %p80
    %p83 = scmp.ne.s32.totalorder %s68, %s82
    %p84 = scmp.eq.s32.totalorder %s16, 0
    %p85 = por %p83, %p84
    %s87 = sadd.s32 %s86, 1
    %p90 = scmp.eq.s32.totalorder %s10, 1
    %p91 = scmp.ne.s32.totalorder %s86, %s88
    %p92 = scmp.eq.s32.totalorder %s10, 0
    %p93 = por %p91, %p92
    %p94 = scmp.ne.s32.totalorder %s86, %s88
    %p95 = scmp.eq.s32.totalorder %s15, 1
    %p96 = por %p94, %p95
    %p97 = scmp.ne.s32.totalorder %s88, %s89
    %p98 = scmp.eq.s32.totalorder %s15, 0
    %p99 = por %p97, %p98
    %p100 = scmp.ne.s32.totalorder %s88, %s89
    %p101 = scmp.eq.s32.totalorder %s16, 1
    %p102 = por %p100, %p101
    %p104 = scmp.ne.s32.totalorder %s89, %s103
    %p105 = scmp.eq.s32.totalorder %s16, 0
    %p106 = por %p104, %p105
    %s107 = ssub.s32 %s10, %s17
    %p108 = scmp.eq.s32.totalorder %s107, 0
    %s110 = sadd.s32 %s109, 1
    %s111 = scalar_select %p108, %s109, %s110
    %p114 = pneg %p108
    %p115 = scmp.eq.s32.totalorder %s10, 1
    %p116 = por %p114, %p115
    %p117 = scmp.ne.s32.totalorder %s109, %s112
    %p118 = scmp.eq.s32.totalorder %s10, 0
    %p119 = por %p117, %p118
    %p120 = scmp.ne.s32.totalorder %s109, %s112
    %p121 = scmp.eq.s32.totalorder %s15, 1
    %p122 = por %p120, %p121
    %p123 = scmp.ne.s32.totalorder %s112, %s113
    %p124 = scmp.eq.s32.totalorder %s15, 0
    %p125 = por %p123, %p124
    %p126 = scmp.ne.s32.totalorder %s112, %s113
    %p127 = scmp.eq.s32.totalorder %s16, 1
    %p128 = por %p126, %p127
    %p130 = scmp.ne.s32.totalorder %s113, %s129
    %p131 = scmp.eq.s32.totalorder %s16, 0
    %p132 = por %p130, %p131
    %p133 = scmp.le.s32.totalorder 1, %s10
    %p134 = scmp.lt.s32.totalorder %s10, 3
    %p135 = pnand %p133, %p134
    %p136 = pneg %p135
    // Predicated region
    $region9: #{transition_forward.1} parent=5 // pred_check
      _
    $region10: #{transition_forward.1} parent=5 // pred_check_branch
      %138 = sbr.rel (%p135) target = $region12
    $region11: #{transition_forward.1} parent=5 // pred_region
      %s139 = ssub.s32 %s10, 1
      // Predicated region
      $region13: #{transition_forward.1} parent=11 // pred_check
        %p140 = pneg %p57
      $region14: #{transition_forward.1} parent=11 // pred_check_branch
        %142 = sbr.rel (%p140) target = $region16
      $region15: #{transition_forward.1} parent=11 // pred_region
        _
      $region16: #{transition_forward.1} parent=11 // pred_fallthru
        _
      // Predicated region
      $region17: #{transition_forward.1} parent=11 // pred_check
        %p143 = pneg %p78
      $region18: #{transition_forward.1} parent=11 // pred_check_branch
        %145 = sbr.rel (%p143) target = $region20
      $region19: #{transition_forward.1} parent=11 // pred_region
        _
      $region20: #{transition_forward.1} parent=11 // pred_fallthru
        _
      // Predicated region
      $region21: #{transition_forward.1} parent=11 // pred_check
        %p146 = pneg %p99
      $region22: #{transition_forward.1} parent=11 // pred_check_branch
        %148 = sbr.rel (%p146) target = $region24
      $region23: #{transition_forward.1} parent=11 // pred_region
        _
      $region24: #{transition_forward.1} parent=11 // pred_fallthru
        _
    $region12: #{transition_forward.1} parent=5 // pred_fallthru
      _
    %p149 = scmp.lt.s32.totalorder %s10, 2
    // Predicated region
    $region25: #{transition_forward.1} parent=5 // pred_check
      %p150 = pneg %p149
    $region26: #{transition_forward.1} parent=5 // pred_check_branch
      %152 = sbr.rel (%p150) target = $region28
    $region27: #{transition_forward.1} parent=5 // pred_region
      // Predicated region
      $region29: #{transition_forward.1} parent=27 // pred_check
        %p153 = pneg %p30
      $region30: #{transition_forward.1} parent=27 // pred_check_branch
        %155 = sbr.rel (%p153) target = $region32
      $region31: #{transition_forward.1} parent=27 // pred_region
        %s156 = smul.u32 8, %s10
        %p157 = scmp.lt.s32.totalorder %s156, 15
        %s158 = scalar_select %p157, %s156, 15
        %s159 = smul.addr %s158, 2
        %s160 = smul.addr %s159, 4
        %s161 = scalar_lea.vmem %s0, %s160
        %s162 = smul.u32 8, %s10
      $region32: #{transition_forward.1} parent=27 // pred_fallthru
        _
    $region28: #{transition_forward.1} parent=5 // pred_fallthru
      _
    %p163 = scmp.le.s32.totalorder 1, %s10
    %p164 = scmp.lt.s32.totalorder %s10, 3
    %p165 = pnand %p163, %p164
    %p166 = pneg %p165
    // Predicated region
    $region33: #{transition_forward.1} parent=5 // pred_check
      _
    $region34: #{transition_forward.1} parent=5 // pred_check_branch
      %168 = sbr.rel (%p165) target = $region36
    $region35: #{transition_forward.1} parent=5 // pred_region
      %s169 = ssub.s32 %s10, 1
      %s170 = smul.u32 8, %s15
      %p171 = scmp.lt.s32.totalorder %s170, 15
      %s172 = scalar_select %p171, %s170, 15
      %s173 = smul.addr %s172, 2
      %s174 = smul.addr %s173, 4
      %s175 = scalar_lea.vmem %s0, %s174
      %p176 = pneg %p36
      %p177 = pneg %p33
      %p178 = pneg %p57
      %p179 = pneg %p54
      %p180 = pneg %p78
      %p181 = pneg %p75
      %p182 = pneg %p99
      %p183 = pneg %p96
      %p184 = pneg %p125
      %p185 = pneg %p122
      %s186 = smul.u32 8, %s15
      %p187 = scmp.lt.s32.totalorder %s186, 15
      %s188 = scalar_select %p187, %s186, 15
      %s189 = smul.addr %s188, 4
      %s190 = scalar_lea.vmem %s4, %s189
      %s191 = smul.u32 8, %s15
      %p192 = scmp.lt.s32.totalorder %s191, 15
      %s193 = scalar_select %p192, %s191, 15
      %s194 = smul.addr %s193, 2
      %s195 = smul.addr %s194, 4
      %s196 = scalar_lea.vmem %s0, %s195
      %s197 = smul.u32 8, %s15
      %s198 = smul.u32 8, %s15
      %p199 = scmp.lt.s32.totalorder %s198, 15
      %s200 = scalar_select %p199, %s198, 15
      %s201 = smul.addr %s200, 4
      %s202 = scalar_lea.vmem %s4, %s201
      %s203 = smul.u32 8, %s15
      %v205 = vld [vmem:[%s1] sm:$0x1]
      %v206 = vld [vmem:[%s2] sm:$0x1]
      %v207 = vld [vmem:[%s196] sm:$0xf]
      %v208 = vld [vmem:[%s196 + $0x8] sm:$0xf]
      %v209 = vld [vmem:[%s196 + $0x10] sm:$0xf]
      %v210 = vld [vmem:[%s196 + $0x18] sm:$0xf]
      %v211 = vld [vmem:[%s196 + $0x20] sm:$0xf]
      %v212 = vld [vmem:[%s196 + $0x28] sm:$0xf]
      %v213 = vld [vmem:[%s196 + $0x30] sm:$0xf]
      %v214 = vld [vmem:[%s196 + $0x38] sm:$0xf]
      %s215 = scalar_lea.vmem %s196, 4
      %v216 = vld [vmem:[%s215] sm:$0xf]
      %v217 = vld [vmem:[%s215 + $0x8] sm:$0xf]
      %v218 = vld [vmem:[%s215 + $0x10] sm:$0xf]
      %v219 = vld [vmem:[%s215 + $0x18] sm:$0xf]
      %v220 = vld [vmem:[%s215 + $0x20] sm:$0xf]
      %v221 = vld [vmem:[%s215 + $0x28] sm:$0xf]
      %v222 = vld [vmem:[%s215 + $0x30] sm:$0xf]
      %v223 = vld [vmem:[%s215 + $0x38] sm:$0xf]
      %v225 = vpack.i.b16 %v205, %v205
      %v227 = vlaneseq
      %v228 = vshrl.u32 %v227, 7
      %v229 = vsub.s32 0, %v228
      %v230 = vrot.slane %v225, %v229
      %v231 = vmul.bf16 %v207, %v230
      %v232 = vmul.bf16 %v208, %v230
      %v233 = vmul.bf16 %v209, %v230
      %v234 = vmul.bf16 %v210, %v230
      %v235 = vmul.bf16 %v211, %v230
      %v236 = vmul.bf16 %v212, %v230
      %v237 = vmul.bf16 %v213, %v230
      %v238 = vmul.bf16 %v214, %v230
      %v240 = vpack.i.b16 %v206, %v206
      %v242 = vlaneseq
      %v243 = vshrl.u32 %v242, 7
      %v244 = vsub.s32 0, %v243
      %v245 = vrot.slane %v240, %v244
      %v246 = vadd.bf16 %v231, %v245
      %v247 = vadd.bf16 %v232, %v245
      %v248 = vadd.bf16 %v233, %v245
      %v249 = vadd.bf16 %v234, %v245
      %v250 = vadd.bf16 %v235, %v245
      %v251 = vadd.bf16 %v236, %v245
      %v252 = vadd.bf16 %v237, %v245
      %v253 = vadd.bf16 %v238, %v245
      %v254 = vmax.bf16 %v246, 0
      %v255 = vmax.bf16 %v247, 0
      %v256 = vmax.bf16 %v248, 0
      %v257 = vmax.bf16 %v249, 0
      %v258 = vmax.bf16 %v250, 0
      %v259 = vmax.bf16 %v251, 0
      %v260 = vmax.bf16 %v252, 0
      %v261 = vmax.bf16 %v253, 0
      %v262 = vmul.bf16 %v216, %v230
      %v263 = vmul.bf16 %v217, %v230
      %v264 = vmul.bf16 %v218, %v230
      %v265 = vmul.bf16 %v219, %v230
      %v266 = vmul.bf16 %v220, %v230
      %v267 = vmul.bf16 %v221, %v230
      %v268 = vmul.bf16 %v222, %v230
      %v269 = vmul.bf16 %v223, %v230
      %v270 = vadd.bf16 %v262, %v245
      %v271 = vadd.bf16 %v263, %v245
      %v272 = vadd.bf16 %v264, %v245
      %v273 = vadd.bf16 %v265, %v245
      %v274 = vadd.bf16 %v266, %v245
      %v275 = vadd.bf16 %v267, %v245
      %v276 = vadd.bf16 %v268, %v245
      %v277 = vadd.bf16 %v269, %v245
      %v278 = vmax.bf16 %v270, 0
      %v279 = vmax.bf16 %v271, 0
      %v280 = vmax.bf16 %v272, 0
      %v281 = vmax.bf16 %v273, 0
      %v282 = vmax.bf16 %v274, 0
      %v283 = vmax.bf16 %v275, 0
      %v284 = vmax.bf16 %v276, 0
      %v285 = vmax.bf16 %v277, 0
      %v286 = vadd.bf16 %v254, %v278
      %v287 = vadd.bf16 %v255, %v279
      %v288 = vadd.bf16 %v256, %v280
      %v289 = vadd.bf16 %v257, %v281
      %v290 = vadd.bf16 %v258, %v282
      %v291 = vadd.bf16 %v259, %v283
      %v292 = vadd.bf16 %v260, %v284
      %v293 = vadd.bf16 %v261, %v285
      %v294 = vld [vmem:[%s3] sm:$0xf]
      %v303 = vunpack.c.l.b16 %v286
      %v304 = vunpack.c.l.b16 %v287
      %v305 = vunpack.c.l.b16 %v288
      %v306 = vunpack.c.l.b16 %v289
      %v307 = vunpack.c.l.b16 %v290
      %v308 = vunpack.c.l.b16 %v291
      %v309 = vunpack.c.l.b16 %v292
      %v310 = vunpack.c.l.b16 %v293
      %v311 = vpack.c.b16 %v304, %v303
      %v312 = vpack.c.b16 %v306, %v305
      %v313 = vpack.c.b16 %v308, %v307
      %v314 = vpack.c.b16 %v310, %v309
      %vm315 = vcmask 64512
      %v317 = vsel %vm315, %v311, 0
      %v320 = vsel %vm315, %v312, 0
      %v323 = vsel %vm315, %v313, 0
      %v326 = vsel %vm315, %v314, 0
      %vm328 = vcmask 1043456
      %v330 = vsel %vm328, %v294, 0
      %332 = vmatprep.subr.bf16.mxu0 0
      %333 = vmatpush1.bf16.msra.mxu0 %v330
      %334 = vmatprep.subr.bf16.mxu0 0
      %335 = vmatpush1.bf16.msra.mxu0 0
      %336 = vmatprep.subr.bf16.mxu0 0
      %337 = vmatpush1.bf16.msra.mxu0 0
      %338 = vmatprep.subr.bf16.mxu0 0
      %339 = vmatpush1.bf16.msra.mxu0 0
      %340 = vmatprep.subr.bf16.mxu0 0
      %341 = vmatpush1.bf16.msra.mxu0 0
      %342 = vmatprep.subr.bf16.mxu0 0
      %343 = vmatpush1.bf16.msra.mxu0 0
      %344 = vmatprep.subr.bf16.mxu0 0
      %345 = vmatpush1.bf16.msra.mxu0 0
      %346 = vmatprep.subr.bf16.mxu0 0
      %347 = vmatpush1.bf16.msra.mxu0 0
      %348 = vmatprep.subr.bf16.mxu0 0
      %349 = vmatpush1.bf16.msra.mxu0 0
      %350 = vmatprep.subr.bf16.mxu0 0
      %351 = vmatpush1.bf16.msra.mxu0 0
      %352 = vmatprep.subr.bf16.mxu0 0
      %353 = vmatpush1.bf16.msra.mxu0 0
      %354 = vmatprep.subr.bf16.mxu0 0
      %355 = vmatpush1.bf16.msra.mxu0 0
      %356 = vmatprep.subr.bf16.mxu0 0
      %357 = vmatpush1.bf16.msra.mxu0 0
      %358 = vmatprep.subr.bf16.mxu0 0
      %359 = vmatpush1.bf16.msra.mxu0 0
      %360 = vmatprep.subr.bf16.mxu0 0
      %361 = vmatpush1.bf16.msra.mxu0 0
      %362 = vmatprep.subr.bf16.mxu0 0
      %363 = vmatpush1.bf16.msra.mxu0 0
      %364 = vmatprep.mubr.bf16.mxu0 0
      %365 = vmatmul.mubr.bf16.gmra.mrb[0].mxu0 %v317
      %v366 = vpop.f32.mrb[0].mxu0
      %v367 = vadd.f32 0.0, %v366
      %v368 = vpop.f32.mrb[0].mxu0
      %v369 = vpop.f32.mrb[0].mxu0
      %v370 = vadd.f32 0.0, %v369
      %v371 = vpop.f32.mrb[0].mxu0
      %372 = vmatprep.mubr.bf16.mxu0 0
      %373 = vmatmul.mubr.bf16.gmra.mrb[0].mxu0 %v320
      %v374 = vpop.f32.mrb[0].mxu0
      %v375 = vadd.f32 0.0, %v374
      %v376 = vpop.f32.mrb[0].mxu0
      %v377 = vpop.f32.mrb[0].mxu0
      %v378 = vadd.f32 0.0, %v377
      %v379 = vpop.f32.mrb[0].mxu0
      %380 = vmatprep.mubr.bf16.mxu0 0
      %381 = vmatmul.mubr.bf16.gmra.mrb[0].mxu0 %v323
      %v382 = vpop.f32.mrb[0].mxu0
      %v383 = vadd.f32 0.0, %v382
      %v384 = vpop.f32.mrb[0].mxu0
      %v385 = vpop.f32.mrb[0].mxu0
      %v386 = vadd.f32 0.0, %v385
      %v387 = vpop.f32.mrb[0].mxu0
      %388 = vmatprep.mubr.bf16.mxu0 0
      %389 = vmatmul.mubr.bf16.gmra.mrb[0].mxu0 %v326
      %v390 = vpop.f32.mrb[0].mxu0
      %v391 = vadd.f32 0.0, %v390
      %v392 = vpop.f32.mrb[0].mxu0
      %v393 = vpop.f32.mrb[0].mxu0
      %v394 = vadd.f32 0.0, %v393
      %v395 = vpop.f32.mrb[0].mxu0
      %396 = vdwg.mxu0
      %v397 = vpack.c.bf16 %v370, %v367
      %v398 = vpack.c.bf16 %v378, %v375
      %v399 = vpack.c.bf16 %v386, %v383
      %v400 = vpack.c.bf16 %v394, %v391
      %v405 = vunpack.c.l.b16 %v397
      %v406 = vunpack.c.h.b16 %v397
      %v407 = vunpack.c.l.b16 %v398
      %v408 = vunpack.c.h.b16 %v398
      %v409 = vunpack.c.l.b16 %v399
      %v410 = vunpack.c.h.b16 %v399
      %v411 = vunpack.c.l.b16 %v400
      %v412 = vunpack.c.h.b16 %v400
      %v413 = vpack.c.b16 %v405, %v405
      %v414 = vpack.c.b16 %v406, %v406
      %v415 = vpack.c.b16 %v407, %v407
      %v416 = vpack.c.b16 %v408, %v408
      %v417 = vpack.c.b16 %v409, %v409
      %v418 = vpack.c.b16 %v410, %v410
      %v419 = vpack.c.b16 %v411, %v411
      %v420 = vpack.c.b16 %v412, %v412
      %429 = vst [vmem:[%s202] sm:$0xf] %v413
      %430 = vst [vmem:[%s202 + $0x4] sm:$0xf] %v414
      %431 = vst [vmem:[%s202 + $0x8] sm:$0xf] %v415
      %432 = vst [vmem:[%s202 + $0xc] sm:$0xf] %v416
      %433 = vst [vmem:[%s202 + $0x10] sm:$0xf] %v417
      %434 = vst [vmem:[%s202 + $0x14] sm:$0xf] %v418
      %435 = vst [vmem:[%s202 + $0x18] sm:$0xf] %v419
      %436 = vst [vmem:[%s202 + $0x1c] sm:$0xf] %v420
      %s437 = smul.u32 8, %s15
      %p438 = scmp.lt.s32.totalorder %s437, 15
      %s439 = scalar_select %p438, %s437, 15
      %s440 = smul.addr %s439, 4
      %s441 = scalar_lea.vmem %s4, %s440
      // Predicated region
      $region37: #{transition_forward.1} parent=35 // pred_check
        %p442 = pneg %p122
      $region38: #{transition_forward.1} parent=35 // pred_check_branch
        %444 = sbr.rel (%p442) target = $region40
      $region39: #{transition_forward.1} parent=35 // pred_region
        %s445 = smul.u32 8, %s15
      $region40: #{transition_forward.1} parent=35 // pred_fallthru
        _
    $region36: #{transition_forward.1} parent=5 // pred_fallthru
      _
    %p446 = scmp.le.s32.totalorder 2, %s10
    // Predicated region
    $region41: #{transition_forward.1} parent=5 // pred_check
      %p447 = pneg %p446
    $region42: #{transition_forward.1} parent=5 // pred_check_branch
      %449 = sbr.rel (%p447) target = $region44
    $region43: #{transition_forward.1} parent=5 // pred_region
      %s450 = ssub.s32 %s10, 2
      // Predicated region
      $region45: #{transition_forward.1} parent=43 // pred_check
        %p451 = pneg %p128
      $region46: #{transition_forward.1} parent=43 // pred_check_branch
        %453 = sbr.rel (%p451) target = $region48
      $region47: #{transition_forward.1} parent=43 // pred_region
        %s454 = smul.u32 8, %s16
        %p455 = scmp.lt.s32.totalorder %s454, 15
        %s456 = scalar_select %p455, %s454, 15
        %s457 = smul.addr %s456, 4
        %s458 = scalar_lea.vmem %s4, %s457
      $region48: #{transition_forward.1} parent=43 // pred_fallthru
        _
    $region44: #{transition_forward.1} parent=5 // pred_fallthru
      _
  $region6: #{transition_forward.1} parent=0 // loop_footer
    %s14 = sadd.s32 1, %s10
  $region7: #{transition_forward.1} parent=0 // loop_footer_branch
    %9 = sbr.rel target = $region3
  $region8: #{transition_forward.1} parent=0 // loop_exit
    _

// kernel: transition_forward.1
$region0: #{transition_forward.1}
  #allocation0 [shape = 'u32[]', space=smem, size = 0x4, offset = 0x4, fixed_abs, tag = 'smem constant byte address 0x4 - core index']
  #allocation1 [shape = 'u32[144,128]{1,0:T(1,128)}', space=vmem, size = 0x12000, scoped, tag = 'internal scratch']
  %s0 = inlined_call_operand.vmem [shape: bf16[16,2,8,8], index: 0, kind: input, shape index: {}]
  %s1 = inlined_call_operand.vmem [shape: bf16[1,8], index: 1, kind: input, shape index: {}]
  %s2 = inlined_call_operand.vmem [shape: bf16[1,8], index: 2, kind: input, shape index: {}]
  %s3 = inlined_call_operand.vmem [shape: bf16[8,128], index: 3, kind: input, shape index: {}]
  %s4 = inlined_call_operand.vmem [shape: bf16[128,128], index: 4, kind: output, shape index: {}]
  %s5 = sld [smem:[#allocation0]]
  $region49: #{transition_forward.1} parent=0
    _
  %s7 = ssub.s32 1, %s5
  %s8 = scalar_select 0, %s7, %s5
  loop: start=0, step=1, limit=4
  $region2: #{transition_forward.1} parent=0 // loop_pre_header
    _
  $region3: #{transition_forward.1} parent=0 // loop_header
    %s10 = sphi 0, %s14
    %p11 = scmp.ge.s32.totalorder %s10, 4
    %s20 = sphi 0, %s22
    %s23 = sphi 0, %s20
    %s24 = sphi 0, %s23
    %s40 = sphi 0, %s24
    %s44 = sphi 0, %s44
    %s46 = sphi 0, %s44
    %s47 = sphi 0, %s46
    %s61 = sphi 0, %s47
    %s65 = sphi 0, %s65
    %s67 = sphi 0, %s65
    %s68 = sphi 0, %s67
    %s82 = sphi 0, %s68
    %s86 = sphi 0, %s86
    %s88 = sphi 0, %s86
    %s89 = sphi 0, %s88
    %s103 = sphi 0, %s89
    %s109 = sphi 0, %s111
    %s112 = sphi 0, %s109
    %s113 = sphi 0, %s112
    %s129 = sphi 0, %s113
  $region4: #{transition_forward.1} parent=0 // loop_header_branch
    %13 = sbr.rel (%p11) target = $region8
  $region5: #{transition_forward.1} parent=0 // loop_body
    %s15 = ssub.s32 %s10, 1
    %s16 = ssub.s32 %s10, 2
    %s17 = sadd.s32 %s10, 1
    %s18 = ssub.s32 %s10, %s17
    %p19 = scmp.eq.s32.totalorder %s18, 0
    %s21 = sadd.s32 %s20, 1
    %s22 = scalar_select %p19, %s20, %s21
    %p25 = pneg %p19
    %p26 = scmp.eq.s32.totalorder %s10, 1
    %p27 = por %p25, %p26
    %p28 = scmp.ne.s32.totalorder %s20, %s23
    %p29 = scmp.eq.s32.totalorder %s10, 0
    %p30 = por %p28, %p29
    %p31 = scmp.ne.s32.totalorder %s20, %s23
    %p32 = scmp.eq.s32.totalorder %s15, 1
    %p33 = por %p31, %p32
    %p34 = scmp.ne.s32.totalorder %s23, %s24
    %p35 = scmp.eq.s32.totalorder %s15, 0
    %p36 = por %p34, %p35
    %p37 = scmp.ne.s32.totalorder %s23, %s24
    %p38 = scmp.eq.s32.totalorder %s16, 1
    %p39 = por %p37, %p38
    %p41 = scmp.ne.s32.totalorder %s24, %s40
    %p42 = scmp.eq.s32.totalorder %s16, 0
    %p43 = por %p41, %p42
    %s45 = sadd.s32 %s44, 1
    %p48 = scmp.eq.s32.totalorder %s10, 1
    %p49 = scmp.ne.s32.totalorder %s44, %s46
    %p50 = scmp.eq.s32.totalorder %s10, 0
    %p51 = por %p49, %p50
    %p52 = scmp.ne.s32.totalorder %s44, %s46
    %p53 = scmp.eq.s32.totalorder %s15, 1
    %p54 = por %p52, %p53
    %p55 = scmp.ne.s32.totalorder %s46, %s47
    %p56 = scmp.eq.s32.totalorder %s15, 0
    %p57 = por %p55, %p56
    %p58 = scmp.ne.s32.totalorder %s46, %s47
    %p59 = scmp.eq.s32.totalorder %s16, 1
    %p60 = por %p58, %p59
    %p62 = scmp.ne.s32.totalorder %s47, %s61
    %p63 = scmp.eq.s32.totalorder %s16, 0
    %p64 = por %p62, %p63
    %s66 = sadd.s32 %s65, 1
    %p69 = scmp.eq.s32.totalorder %s10, 1
    %p70 = scmp.ne.s32.totalorder %s65, %s67
    %p71 = scmp.eq.s32.totalorder %s10, 0
    %p72 = por %p70, %p71
    %p73 = scmp.ne.s32.totalorder %s65, %s67
    %p74 = scmp.eq.s32.totalorder %s15, 1
    %p75 = por %p73, %p74
    %p76 = scmp.ne.s32.totalorder %s67, %s68
    %p77 = scmp.eq.s32.totalorder %s15, 0
    %p78 = por %p76, %p77
    %p79 = scmp.ne.s32.totalorder %s67, %s68
    %p80 = scmp.eq.s32.totalorder %s16, 1
    %p81 = por %p79, %p80
    %p83 = scmp.ne.s32.totalorder %s68, %s82
    %p84 = scmp.eq.s32.totalorder %s16, 0
    %p85 = por %p83, %p84
    %s87 = sadd.s32 %s86, 1
    %p90 = scmp.eq.s32.totalorder %s10, 1
    %p91 = scmp.ne.s32.totalorder %s86, %s88
    %p92 = scmp.eq.s32.totalorder %s10, 0
    %p93 = por %p91, %p92
    %p94 = scmp.ne.s32.totalorder %s86, %s88
    %p95 = scmp.eq.s32.totalorder %s15, 1
    %p96 = por %p94, %p95
    %p97 = scmp.ne.s32.totalorder %s88, %s89
    %p98 = scmp.eq.s32.totalorder %s15, 0
    %p99 = por %p97, %p98
    %p100 = scmp.ne.s32.totalorder %s88, %s89
    %p101 = scmp.eq.s32.totalorder %s16, 1
    %p102 = por %p100, %p101
    %p104 = scmp.ne.s32.totalorder %s89, %s103
    %p105 = scmp.eq.s32.totalorder %s16, 0
    %p106 = por %p104, %p105
    %s107 = ssub.s32 %s10, %s17
    %p108 = scmp.eq.s32.totalorder %s107, 0
    %s110 = sadd.s32 %s109, 1
    %s111 = scalar_select %p108, %s109, %s110
    %p114 = pneg %p108
    %p115 = scmp.eq.s32.totalorder %s10, 1
    %p116 = por %p114, %p115
    %p117 = scmp.ne.s32.totalorder %s109, %s112
    %p118 = scmp.eq.s32.totalorder %s10, 0
    %p119 = por %p117, %p118
    %p120 = scmp.ne.s32.totalorder %s109, %s112
    %p121 = scmp.eq.s32.totalorder %s15, 1
    %p122 = por %p120, %p121
    %p123 = scmp.ne.s32.totalorder %s112, %s113
    %p124 = scmp.eq.s32.totalorder %s15, 0
    %p125 = por %p123, %p124
    %p126 = scmp.ne.s32.totalorder %s112, %s113
    %p127 = scmp.eq.s32.totalorder %s16, 1
    %p128 = por %p126, %p127
    %p130 = scmp.ne.s32.totalorder %s113, %s129
    %p131 = scmp.eq.s32.totalorder %s16, 0
    %p132 = por %p130, %p131
    %p133 = scmp.le.s32.totalorder 1, %s10
    %p134 = scmp.lt.s32.totalorder %s10, 3
    %p135 = pnand %p133, %p134
    %p136 = pneg %p135
    // Predicated region
    $region9: #{transition_forward.1} parent=5 // pred_check
      _
    $region10: #{transition_forward.1} parent=5 // pred_check_branch
      %138 = sbr.rel (%p135) target = $region12
    $region11: #{transition_forward.1} parent=5 // pred_region
      %s139 = ssub.s32 %s10, 1
      // Predicated region
      $region13: #{transition_forward.1} parent=11 // pred_check
        %p140 = pneg %p57
      $region14: #{transition_forward.1} parent=11 // pred_check_branch
        %142 = sbr.rel (%p140) target = $region16
      $region15: #{transition_forward.1} parent=11 // pred_region
        _
      $region16: #{transition_forward.1} parent=11 // pred_fallthru
        _
      // Predicated region
      $region17: #{transition_forward.1} parent=11 // pred_check
        %p143 = pneg %p78
      $region18: #{transition_forward.1} parent=11 // pred_check_branch
        %145 = sbr.rel (%p143) target = $region20
      $region19: #{transition_forward.1} parent=11 // pred_region
        _
      $region20: #{transition_forward.1} parent=11 // pred_fallthru
        _
      // Predicated region
      $region21: #{transition_forward.1} parent=11 // pred_check
        %p146 = pneg %p99
      $region22: #{transition_forward.1} parent=11 // pred_check_branch
        %148 = sbr.rel (%p146) target = $region24
      $region23: #{transition_forward.1} parent=11 // pred_region
        _
      $region24: #{transition_forward.1} parent=11 // pred_fallthru
        _
    $region12: #{transition_forward.1} parent=5 // pred_fallthru
      _
    %p149 = scmp.lt.s32.totalorder %s10, 2
    // Predicated region
    $region25: #{transition_forward.1} parent=5 // pred_check
      %p150 = pneg %p149
    $region26: #{transition_forward.1} parent=5 // pred_check_branch
      %152 = sbr.rel (%p150) target = $region28
    $region27: #{transition_forward.1} parent=5 // pred_region
      // Predicated region
      $region29: #{transition_forward.1} parent=27 // pred_check
        %p153 = pneg %p30
      $region30: #{transition_forward.1} parent=27 // pred_check_branch
        %155 = sbr.rel (%p153) target = $region32
      $region31: #{transition_forward.1} parent=27 // pred_region
        %s156 = smul.u32 8, %s10
        %p157 = scmp.lt.s32.totalorder %s156, 15
        %s158 = scalar_select %p157, %s156, 15
        %s159 = smul.addr %s158, 2
        %s160 = smul.addr %s159, 4
        %s161 = scalar_lea.vmem %s0, %s160
        %s162 = smul.u32 8, %s10
      $region32: #{transition_forward.1} parent=27 // pred_fallthru
        _
    $region28: #{transition_forward.1} parent=5 // pred_fallthru
      _
    %p163 = scmp.le.s32.totalorder 1, %s10
    %p164 = scmp.lt.s32.totalorder %s10, 3
    %p165 = pnand %p163, %p164
    %p166 = pneg %p165
    // Predicated region
    $region33: #{transition_forward.1} parent=5 // pred_check
      _
    $region34: #{transition_forward.1} parent=5 // pred_check_branch
      %168 = sbr.rel (%p165) target = $region36
    $region35: #{transition_forward.1} parent=5 // pred_region
      %s169 = ssub.s32 %s10, 1
      %s170 = smul.u32 8, %s15
      %p171 = scmp.lt.s32.totalorder %s170, 15
      %s172 = scalar_select %p171, %s170, 15
      %s173 = smul.addr %s172, 2
      %s174 = smul.addr %s173, 4
      %s175 = scalar_lea.vmem %s0, %s174
      %p176 = pneg %p36
      %p177 = pneg %p33
      %p178 = pneg %p57
      %p179 = pneg %p54
      %p180 = pneg %p78
      %p181 = pneg %p75
      %p182 = pneg %p99
      %p183 = pneg %p96
      %p184 = pneg %p125
      %p185 = pneg %p122
      %s186 = smul.u32 8, %s15
      %p187 = scmp.lt.s32.totalorder %s186, 15
      %s188 = scalar_select %p187, %s186, 15
      %s189 = smul.addr %s188, 4
      %s190 = scalar_lea.vmem %s4, %s189
      %s191 = smul.u32 8, %s15
      %p192 = scmp.lt.s32.totalorder %s191, 15
      %s193 = scalar_select %p192, %s191, 15
      %s194 = smul.addr %s193, 2
      %s195 = smul.addr %s194, 4
      %s196 = scalar_lea.vmem %s0, %s195
      %s197 = smul.u32 8, %s15
      %s198 = smul.u32 8, %s15
      %p199 = scmp.lt.s32.totalorder %s198, 15
      %s200 = scalar_select %p199, %s198, 15
      %s201 = smul.addr %s200, 4
      %s202 = scalar_lea.vmem %s4, %s201
      %s203 = smul.u32 8, %s15
      %v205 = vld [vmem:[%s1] sm:$0x1]
      %v206 = vld [vmem:[%s2] sm:$0x1]
      %v207 = vld [vmem:[%s196] sm:$0xf]
      %v208 = vld [vmem:[%s196 + $0x8] sm:$0xf]
      %v209 = vld [vmem:[%s196 + $0x10] sm:$0xf]
      %v210 = vld [vmem:[%s196 + $0x18] sm:$0xf]
      %v211 = vld [vmem:[%s196 + $0x20] sm:$0xf]
      %v212 = vld [vmem:[%s196 + $0x28] sm:$0xf]
      %v213 = vld [vmem:[%s196 + $0x30] sm:$0xf]
      %v214 = vld [vmem:[%s196 + $0x38] sm:$0xf]
      %s215 = scalar_lea.vmem %s196, 4
      %v216 = vld [vmem:[%s215] sm:$0xf]
      %v217 = vld [vmem:[%s215 + $0x8] sm:$0xf]
      %v218 = vld [vmem:[%s215 + $0x10] sm:$0xf]
      %v219 = vld [vmem:[%s215 + $0x18] sm:$0xf]
      %v220 = vld [vmem:[%s215 + $0x20] sm:$0xf]
      %v221 = vld [vmem:[%s215 + $0x28] sm:$0xf]
      %v222 = vld [vmem:[%s215 + $0x30] sm:$0xf]
      %v223 = vld [vmem:[%s215 + $0x38] sm:$0xf]
      %v225 = vpack.i.b16 %v205, %v205
      %v227 = vlaneseq
      %v228 = vshrl.u32 %v227, 7
      %v229 = vsub.s32 0, %v228
      %v230 = vrot.slane %v225, %v229
      %v231 = vmul.bf16 %v207, %v230
      %v232 = vmul.bf16 %v208, %v230
      %v233 = vmul.bf16 %v209, %v230
      %v234 = vmul.bf16 %v210, %v230
      %v235 = vmul.bf16 %v211, %v230
      %v236 = vmul.bf16 %v212, %v230
      %v237 = vmul.bf16 %v213, %v230
      %v238 = vmul.bf16 %v214, %v230
      %v240 = vpack.i.b16 %v206, %v206
      %v242 = vlaneseq
      %v243 = vshrl.u32 %v242, 7
      %v244 = vsub.s32 0, %v243
      %v245 = vrot.slane %v240, %v244
      %v246 = vadd.bf16 %v231, %v245
      %v247 = vadd.bf16 %v232, %v245
      %v248 = vadd.bf16 %v233, %v245
      %v249 = vadd.bf16 %v234, %v245
      %v250 = vadd.bf16 %v235, %v245
      %v251 = vadd.bf16 %v236, %v245
      %v252 = vadd.bf16 %v237, %v245
      %v253 = vadd.bf16 %v238, %v245
      %v254 = vmax.bf16 %v246, 0
      %v255 = vmax.bf16 %v247, 0
      %v256 = vmax.bf16 %v248, 0
      %v257 = vmax.bf16 %v249, 0
      %v258 = vmax.bf16 %v250, 0
      %v259 = vmax.bf16 %v251, 0
      %v260 = vmax.bf16 %v252, 0
      %v261 = vmax.bf16 %v253, 0
      %v262 = vmul.bf16 %v216, %v230
      %v263 = vmul.bf16 %v217, %v230
      %v264 = vmul.bf16 %v218, %v230
      %v265 = vmul.bf16 %v219, %v230
      %v266 = vmul.bf16 %v220, %v230
      %v267 = vmul.bf16 %v221, %v230
      %v268 = vmul.bf16 %v222, %v230
      %v269 = vmul.bf16 %v223, %v230
      %v270 = vadd.bf16 %v262, %v245
      %v271 = vadd.bf16 %v263, %v245
      %v272 = vadd.bf16 %v264, %v245
      %v273 = vadd.bf16 %v265, %v245
      %v274 = vadd.bf16 %v266, %v245
      %v275 = vadd.bf16 %v267, %v245
      %v276 = vadd.bf16 %v268, %v245
      %v277 = vadd.bf16 %v269, %v245
      %v278 = vmax.bf16 %v270, 0
      %v279 = vmax.bf16 %v271, 0
      %v280 = vmax.bf16 %v272, 0
      %v281 = vmax.bf16 %v273, 0
      %v282 = vmax.bf16 %v274, 0
      %v283 = vmax.bf16 %v275, 0
      %v284 = vmax.bf16 %v276, 0
      %v285 = vmax.bf16 %v277, 0
      %v286 = vadd.bf16 %v254, %v278
      %v287 = vadd.bf16 %v255, %v279
      %v288 = vadd.bf16 %v256, %v280
      %v289 = vadd.bf16 %v257, %v281
      %v290 = vadd.bf16 %v258, %v282
      %v291 = vadd.bf16 %v259, %v283
      %v292 = vadd.bf16 %v260, %v284
      %v293 = vadd.bf16 %v261, %v285
      %v294 = vld [vmem:[%s3] sm:$0xf]
      %v303 = vunpack.c.l.b16 %v286
      %v304 = vunpack.c.l.b16 %v287
      %v305 = vunpack.c.l.b16 %v288
      %v306 = vunpack.c.l.b16 %v289
      %v307 = vunpack.c.l.b16 %v290
      %v308 = vunpack.c.l.b16 %v291
      %v309 = vunpack.c.l.b16 %v292
      %v310 = vunpack.c.l.b16 %v293
      %v311 = vpack.c.b16 %v304, %v303
      %v312 = vpack.c.b16 %v306, %v305
      %v313 = vpack.c.b16 %v308, %v307
      %v314 = vpack.c.b16 %v310, %v309
      %vm315 = vcmask 64512
      %v317 = vsel %vm315, %v311, 0
      %v320 = vsel %vm315, %v312, 0
      %v323 = vsel %vm315, %v313, 0
      %v326 = vsel %vm315, %v314, 0
      %vm328 = vcmask 1043456
      %v330 = vsel %vm328, %v294, 0
      %332 = vmatprep.subr.bf16.mxu0 0
      %333 = vmatpush1.bf16.msra.mxu0 %v330
      %334 = vmatprep.subr.bf16.mxu0 0
      %335 = vmatpush1.bf16.msra.mxu0 0
      %336 = vmatprep.subr.bf16.mxu0 0
      %337 = vmatpush1.bf16.msra.mxu0 0
      %338 = vmatprep.subr.bf16.mxu0 0
      %339 = vmatpush1.bf16.msra.mxu0 0
      %340 = vmatprep.subr.bf16.mxu0 0
      %341 = vmatpush1.bf16.msra.mxu0 0
      %342 = vmatprep.subr.bf16.mxu0 0
      %343 = vmatpush1.bf16.msra.mxu0 0
      %344 = vmatprep.subr.bf16.mxu0 0
      %345 = vmatpush1.bf16.msra.mxu0 0
      %346 = vmatprep.subr.bf16.mxu0 0
      %347 = vmatpush1.bf16.msra.mxu0 0
      %348 = vmatprep.subr.bf16.mxu0 0
      %349 = vmatpush1.bf16.msra.mxu0 0
      %350 = vmatprep.subr.bf16.mxu0 0
      %351 = vmatpush1.bf16.msra.mxu0 0
      %352 = vmatprep.subr.bf16.mxu0 0
      %353 = vmatpush1.bf16.msra.mxu0 0
      %354 = vmatprep.subr.bf16.mxu0 0
      %355 = vmatpush1.bf16.msra.mxu0 0
      %356 = vmatprep.subr.bf16.mxu0 0
      %357 = vmatpush1.bf16.msra.mxu0 0
      %358 = vmatprep.subr.bf16.mxu0 0
      %359 = vmatpush1.bf16.msra.mxu0 0
      %360 = vmatprep.subr.bf16.mxu0 0
      %361 = vmatpush1.bf16.msra.mxu0 0
      %362 = vmatprep.subr.bf16.mxu0 0
      %363 = vmatpush1.bf16.msra.mxu0 0
      %364 = vmatprep.mubr.bf16.mxu0 0
      %365 = vmatmul.mubr.bf16.gmra.mrb[0].mxu0 %v317
      %v366 = vpop.f32.mrb[0].mxu0
      %v367 = vadd.f32 0.0, %v366
      %v368 = vpop.f32.mrb[0].mxu0
      %v369 = vpop.f32.mrb[0].mxu0
      %v370 = vadd.f32 0.0, %v369
      %v371 = vpop.f32.mrb[0].mxu0
      %372 = vmatprep.mubr.bf16.mxu0 0
      %373 = vmatmul.mubr.bf16.gmra.mrb[0].mxu0 %v320
      %v374 = vpop.f32.mrb[0].mxu0
      %v375 = vadd.f32 0.0, %v374
      %v376 = vpop.f32.mrb[0].mxu0
      %v377 = vpop.f32.mrb[0].mxu0
      %v378 = vadd.f32 0.0, %v377
      %v379 = vpop.f32.mrb[0].mxu0
      %380 = vmatprep.mubr.bf16.mxu0 0
      %381 = vmatmul.mubr.bf16.gmra.mrb[0].mxu0 %v323
      %v382 = vpop.f32.mrb[0].mxu0
      %v383 = vadd.f32 0.0, %v382
      %v384 = vpop.f32.mrb[0].mxu0
      %v385 = vpop.f32.mrb[0].mxu0
      %v386 = vadd.f32 0.0, %v385
      %v387 = vpop.f32.mrb[0].mxu0
      %388 = vmatprep.mubr.bf16.mxu0 0
      %389 = vmatmul.mubr.bf16.gmra.mrb[0].mxu0 %v326
      %v390 = vpop.f32.mrb[0].mxu0
      %v391 = vadd.f32 0.0, %v390
      %v392 = vpop.f32.mrb[0].mxu0
      %v393 = vpop.f32.mrb[0].mxu0
      %v394 = vadd.f32 0.0, %v393
      %v395 = vpop.f32.mrb[0].mxu0
      %396 = vdwg.mxu0
      %v397 = vpack.c.bf16 %v370, %v367
      %v398 = vpack.c.bf16 %v378, %v375
      %v399 = vpack.c.bf16 %v386, %v383
      %v400 = vpack.c.bf16 %v394, %v391
      %v405 = vunpack.c.l.b16 %v397
      %v406 = vunpack.c.h.b16 %v397
      %v407 = vunpack.c.l.b16 %v398
      %v408 = vunpack.c.h.b16 %v398
      %v409 = vunpack.c.l.b16 %v399
      %v410 = vunpack.c.h.b16 %v399
      %v411 = vunpack.c.l.b16 %v400
      %v412 = vunpack.c.h.b16 %v400
      %v413 = vpack.c.b16 %v405, %v405
      %v414 = vpack.c.b16 %v406, %v406
      %v415 = vpack.c.b16 %v407, %v407
      %v416 = vpack.c.b16 %v408, %v408
      %v417 = vpack.c.b16 %v409, %v409
      %v418 = vpack.c.b16 %v410, %v410
      %v419 = vpack.c.b16 %v411, %v411
      %v420 = vpack.c.b16 %v412, %v412
      %429 = vst [vmem:[%s202] sm:$0xf] %v413
      %430 = vst [vmem:[%s202 + $0x4] sm:$0xf] %v414
      %431 = vst [vmem:[%s202 + $0x8] sm:$0xf] %v415
      %432 = vst [vmem:[%s202 + $0xc] sm:$0xf] %v416
      %433 = vst [vmem:[%s202 + $0x10] sm:$0xf] %v417
      %434 = vst [vmem:[%s202 + $0x14] sm:$0xf] %v418
      %435 = vst [vmem:[%s202 + $0x18] sm:$0xf] %v419
      %436 = vst [vmem:[%s202 + $0x1c] sm:$0xf] %v420
      %s437 = smul.u32 8, %s15
      %p438 = scmp.lt.s32.totalorder %s437, 15
      %s439 = scalar_select %p438, %s437, 15
      %s440 = smul.addr %s439, 4
      %s441 = scalar_lea.vmem %s4, %s440
      // Predicated region
      $region37: #{transition_forward.1} parent=35 // pred_check
        %p442 = pneg %p122
      $region38: #{transition_forward.1} parent=35 // pred_check_branch
        %444 = sbr.rel (%p442) target = $region40
      $region39: #{transition_forward.1} parent=35 // pred_region
        %s445 = smul.u32 8, %s15
      $region40: #{transition_forward.1} parent=35 // pred_fallthru
        _
    $region36: #{transition_forward.1} parent=5 // pred_fallthru
      _
    %p446 = scmp.le.s32.totalorder 2, %s10
    // Predicated region
    $region41: #{transition_forward.1} parent=5 // pred_check
      %p447 = pneg %p446
    $region42: #{transition_forward.1} parent=5 // pred_check_branch
      %449 = sbr.rel (%p447) target = $region44
    $region43: #{transition_forward.1} parent=5 // pred_region
      %s450 = ssub.s32 %s10, 2
      // Predicated region
      $region45: #{transition_forward.1} parent=43 // pred_check
        %p451 = pneg %p128
      $region46: #{transition_forward.1} parent=43 // pred_check_branch
        %453 = sbr.rel (%p451) target = $region48
      $region47: #{transition_forward.1} parent=43 // pred_region
        %s454 = smul.u32 8, %s16
        %p455 = scmp.lt.s32.totalorder %s454, 15
        %s456 = scalar_select %p455, %s454, 15
        %s457 = smul.addr %s456, 4
        %s458 = scalar_lea.vmem %s4, %s457
      $region48: #{transition_forward.1} parent=43 // pred_fallthru
        _
    $region44: #{transition_forward.1} parent=5 // pred_fallthru
      _
  $region6: #{transition_forward.1} parent=0 // loop_footer
    %s14 = sadd.s32 1, %s10
  $region7: #{transition_forward.1} parent=0 // loop_footer_branch
    %9 = sbr.rel target = $region3
  $region8: #{transition_forward.1} parent=0 // loop_exit
    _

</llo_original>
